<compile_context>
chip_gen: v7x
topology: tpu7x:2x2x1
jax: 0.10.0
libtpu: 0.0.40
codegen_flags: <defaults>
</compile_context>

<pallas_src>
import functools

import jax
import jax.numpy as jnp
from jax.experimental import pallas as pl
from jax.experimental.pallas import tpu as pltpu


def _device_kind() -> str:
    try:
        return jax.devices()[0].device_kind.lower()
    except Exception:
        return ""


def _target_descriptor_count() -> int:
    kind = _device_kind()
    if "v5 lite" in kind or "v5e" in kind or "v5lite" in kind:
        return 4   # ~0.8 TB/s: a few large contiguous streams already saturate HBM
    if "v7" in kind or "7x" in kind:
        return 16  # ~3.2 TB/s: deeper window hides per-descriptor fixed cost
    return 8       # v6e & default


def _num_tensorcores() -> int:
    kind = _device_kind()
    return 2 if ("v7" in kind or "7x" in kind) else 1


def _plan_descriptors(batch, n_out, start_index, target):
    """Static copy plan: tuple of (b0, bs, src_row0, dst_row0, rows)."""
    descs = []
    if batch >= target:
        # Coalesce batches into ~target strided descriptors.
        groups = min(target, batch)
        base, rem = divmod(batch, groups)
        b0 = 0
        for g in range(groups):
            bs = base + (1 if g < rem else 0)
            descs.append((b0, bs, start_index, 0, n_out))
            b0 += bs
    else:
        # Split each per-batch contiguous region along the row axis.
        splits = min(n_out, -(-target // batch))  # ceil(target / batch), >= 1
        base, rem = divmod(n_out, splits)
        for b in range(batch):
            r0 = 0
            for s in range(splits):
                rows = base + (1 if s < rem else 0)
                descs.append((b, 1, start_index + r0, r0, rows))
                r0 += rows
    return tuple(descs)


def _slice_copy_kernel(x_hbm, o_hbm, copy_sems, *, descriptors, num_cores):
    # x_hbm: (B, N, C) raw HBM ref; o_hbm: (B, n_out, C) raw HBM ref.
    # The slice offset lives in the source ref view; the body only issues and
    # waits on HBM->HBM DMA descriptors (no VPU/XLU/MXU work, zero VMEM).
    def make(i):
        b0, bs, src_r0, dst_r0, rows = descriptors[i]
        return pltpu.make_async_copy(
            x_hbm.at[pl.ds(b0, bs), pl.ds(src_r0, rows), :],
            o_hbm.at[pl.ds(b0, bs), pl.ds(dst_r0, rows), :],
            copy_sems.at[i],  # one semaphore per descriptor: exact-size waits
        )

    n = len(descriptors)
    if num_cores == 1:
        for i in range(n):
            make(i).start()
        for i in range(n):
            make(i).wait()
    else:
        core = pl.program_id(0)
        for i in range(n):
            @pl.when(core == (i % num_cores))
            def _start(i=i):
                make(i).start()
        for i in range(n):
            @pl.when(core == (i % num_cores))
            def _wait(i=i):
                make(i).wait()


def slice_forward(x: jax.Array, start_index: int = 1) -> jax.Array:
    """Equivalent of torch `x[:, start_index:]` for an input of rank >= 2."""
    if x.ndim < 2:
        raise ValueError("slice_forward expects an input of rank >= 2")
    B, N = int(x.shape[0]), int(x.shape[1])
    trailing = tuple(int(d) for d in x.shape[2:])

    start = int(start_index)
    if start < 0:
        start = max(N + start, 0)
    start = min(start, N)
    n_out = N - start

    if start == 0:
        return x              # fast path: nothing sliced off -> no copy at all
    if n_out == 0:
        return x[:, 0:0]      # empty result; no kernel needed

    # Flatten trailing dims (contiguous => free reshape) so the kernel sees (B, N, C).
    C = 1
    for d in trailing:
        C *= d
    x3 = x.reshape(B, N, C)

    num_cores = _num_tensorcores()
    target = _target_descriptor_count()
    descriptors = _plan_descriptors(B, n_out, start, target)

    kernel = functools.partial(
        _slice_copy_kernel, descriptors=descriptors, num_cores=num_cores)

    itemsize = jnp.dtype(x.dtype).itemsize
    call_kwargs = dict(
        out_shape=jax.ShapeDtypeStruct((B, n_out, C), x.dtype),
        # Raw HBM refs: no automatic HBM<->VMEM pipeline; the kernel only
        # issues DMA descriptors.
        in_specs=[pl.BlockSpec(memory_space=pl.ANY)],
        out_specs=pl.BlockSpec(memory_space=pl.ANY),
        scratch_shapes=[pltpu.SemaphoreType.DMA((len(descriptors),))],
        # Pure memory traffic: let XLA overlap it with neighbouring compute.
        cost_estimate=pl.CostEstimate(
            flops=0, transcendentals=0,
            bytes_accessed=2 * B * n_out * C * itemsize),
    )
    if num_cores > 1:
        call_kwargs["grid"] = (num_cores,)
        call_kwargs["compiler_params"] = pltpu.CompilerParams(
            dimension_semantics=("parallel",))

    out3 = pl.pallas_call(kernel, **call_kwargs)(x3)
    return out3.reshape((B, n_out) + trailing)


if __name__ == "__main__":
    key = jax.random.PRNGKey(0)
    k1, k2 = jax.random.split(key)

    # Small-B regime (per-batch row-split descriptors): batch=2, channels=4, 16x16.
    x1 = jax.random.normal(k1, (2, 4, 16, 16), dtype=jnp.float32)
    y1 = slice_forward(x1, start_index=1)
    jax.block_until_ready(y1)
    ref1 = x1[:, 1:]
    assert y1.shape == ref1.shape, (y1.shape, ref1.shape)
    assert jnp.array_equal(y1, ref1), "small-B path mismatch with reference slice"

    # Large-B regime (batch-coalesced strided descriptors).
    x2 = jax.random.normal(k2, (16, 8, 32), dtype=jnp.float32)
    y2 = slice_forward(x2, start_index=2)
    jax.block_until_ready(y2)
    ref2 = x2[:, 2:]
    assert y2.shape == ref2.shape, (y2.shape, ref2.shape)
    assert jnp.array_equal(y2, ref2), "large-B path mismatch with reference slice"

    # start_index == 0 fast path: pass-through, no copy launched.
    y0 = slice_forward(x1, start_index=0)
    assert jnp.array_equal(y0, x1), "start_index=0 fast path mismatch"

    print("KERNEL_OK")
</pallas_src>

<mosaic_0001>
module attributes {stable_mosaic.version = 11 : i64} {
  func.func @_slice_copy_kernel(%arg0: memref<2x4x256xf32, #tpu.memory_space<any>>, %arg1: memref<2x3x256xf32, #tpu.memory_space<any>>, %arg2: memref<6x!tpu.dma_semaphore, #tpu.memory_space<semaphore_mem>>) attributes {dimension_semantics = [], scalar_prefetch = 0 : i64, scratch_operands = 1 : i64, tpu.core_type = #tpu.core_type<tc>} {
    %c0_i32 = arith.constant 0 : i32
    %c0_i32_0 = arith.constant 0 : i32
    %c1_i32 = arith.constant 1 : i32
    %c0_i32_1 = arith.constant 0 : i32
    %0 = tpu.memref_slice %arg0[%c0_i32_0, %c1_i32, %c0_i32_1] : memref<2x4x256xf32, #tpu.memory_space<any>> -> memref<1x1x256xf32, #tpu.memory_space<any>>
    %c0_i32_2 = arith.constant 0 : i32
    %c0_i32_3 = arith.constant 0 : i32
    %c0_i32_4 = arith.constant 0 : i32
    %1 = tpu.memref_slice %arg1[%c0_i32_2, %c0_i32_3, %c0_i32_4] : memref<2x3x256xf32, #tpu.memory_space<any>> -> memref<1x1x256xf32, #tpu.memory_space<any>>
    %2 = tpu.memref_slice %arg2[%c0_i32] : memref<6x!tpu.dma_semaphore, #tpu.memory_space<semaphore_mem>> -> memref<1x!tpu.dma_semaphore, #tpu.memory_space<semaphore_mem>>
    %3 = tpu.memref_squeeze %2 : memref<1x!tpu.dma_semaphore, #tpu.memory_space<semaphore_mem>> -> memref<!tpu.dma_semaphore, #tpu.memory_space<semaphore_mem>>
    tpu.enqueue_dma source(%0 : memref<1x1x256xf32, #tpu.memory_space<any>>) target(%1 : memref<1x1x256xf32, #tpu.memory_space<any>>) target_semaphore(%3 : memref<!tpu.dma_semaphore, #tpu.memory_space<semaphore_mem>>)
    %c1_i32_5 = arith.constant 1 : i32
    %c0_i32_6 = arith.constant 0 : i32
    %c2_i32 = arith.constant 2 : i32
    %c0_i32_7 = arith.constant 0 : i32
    %4 = tpu.memref_slice %arg0[%c0_i32_6, %c2_i32, %c0_i32_7] : memref<2x4x256xf32, #tpu.memory_space<any>> -> memref<1x1x256xf32, #tpu.memory_space<any>>
    %c0_i32_8 = arith.constant 0 : i32
    %c1_i32_9 = arith.constant 1 : i32
    %c0_i32_10 = arith.constant 0 : i32
    %5 = tpu.memref_slice %arg1[%c0_i32_8, %c1_i32_9, %c0_i32_10] : memref<2x3x256xf32, #tpu.memory_space<any>> -> memref<1x1x256xf32, #tpu.memory_space<any>>
    %6 = tpu.memref_slice %arg2[%c1_i32_5] : memref<6x!tpu.dma_semaphore, #tpu.memory_space<semaphore_mem>> -> memref<1x!tpu.dma_semaphore, #tpu.memory_space<semaphore_mem>>
    %7 = tpu.memref_squeeze %6 : memref<1x!tpu.dma_semaphore, #tpu.memory_space<semaphore_mem>> -> memref<!tpu.dma_semaphore, #tpu.memory_space<semaphore_mem>>
    tpu.enqueue_dma source(%4 : memref<1x1x256xf32, #tpu.memory_space<any>>) target(%5 : memref<1x1x256xf32, #tpu.memory_space<any>>) target_semaphore(%7 : memref<!tpu.dma_semaphore, #tpu.memory_space<semaphore_mem>>)
    %c2_i32_11 = arith.constant 2 : i32
    %c0_i32_12 = arith.constant 0 : i32
    %c3_i32 = arith.constant 3 : i32
    %c0_i32_13 = arith.constant 0 : i32
    %8 = tpu.memref_slice %arg0[%c0_i32_12, %c3_i32, %c0_i32_13] : memref<2x4x256xf32, #tpu.memory_space<any>> -> memref<1x1x256xf32, #tpu.memory_space<any>>
    %c0_i32_14 = arith.constant 0 : i32
    %c2_i32_15 = arith.constant 2 : i32
    %c0_i32_16 = arith.constant 0 : i32
    %9 = tpu.memref_slice %arg1[%c0_i32_14, %c2_i32_15, %c0_i32_16] : memref<2x3x256xf32, #tpu.memory_space<any>> -> memref<1x1x256xf32, #tpu.memory_space<any>>
    %10 = tpu.memref_slice %arg2[%c2_i32_11] : memref<6x!tpu.dma_semaphore, #tpu.memory_space<semaphore_mem>> -> memref<1x!tpu.dma_semaphore, #tpu.memory_space<semaphore_mem>>
    %11 = tpu.memref_squeeze %10 : memref<1x!tpu.dma_semaphore, #tpu.memory_space<semaphore_mem>> -> memref<!tpu.dma_semaphore, #tpu.memory_space<semaphore_mem>>
    tpu.enqueue_dma source(%8 : memref<1x1x256xf32, #tpu.memory_space<any>>) target(%9 : memref<1x1x256xf32, #tpu.memory_space<any>>) target_semaphore(%11 : memref<!tpu.dma_semaphore, #tpu.memory_space<semaphore_mem>>)
    %c3_i32_17 = arith.constant 3 : i32
    %c1_i32_18 = arith.constant 1 : i32
    %c1_i32_19 = arith.constant 1 : i32
    %c0_i32_20 = arith.constant 0 : i32
    %12 = tpu.memref_slice %arg0[%c1_i32_18, %c1_i32_19, %c0_i32_20] : memref<2x4x256xf32, #tpu.memory_space<any>> -> memref<1x1x256xf32, #tpu.memory_space<any>>
    %c1_i32_21 = arith.constant 1 : i32
    %c0_i32_22 = arith.constant 0 : i32
    %c0_i32_23 = arith.constant 0 : i32
    %13 = tpu.memref_slice %arg1[%c1_i32_21, %c0_i32_22, %c0_i32_23] : memref<2x3x256xf32, #tpu.memory_space<any>> -> memref<1x1x256xf32, #tpu.memory_space<any>>
    %14 = tpu.memref_slice %arg2[%c3_i32_17] : memref<6x!tpu.dma_semaphore, #tpu.memory_space<semaphore_mem>> -> memref<1x!tpu.dma_semaphore, #tpu.memory_space<semaphore_mem>>
    %15 = tpu.memref_squeeze %14 : memref<1x!tpu.dma_semaphore, #tpu.memory_space<semaphore_mem>> -> memref<!tpu.dma_semaphore, #tpu.memory_space<semaphore_mem>>
    tpu.enqueue_dma source(%12 : memref<1x1x256xf32, #tpu.memory_space<any>>) target(%13 : memref<1x1x256xf32, #tpu.memory_space<any>>) target_semaphore(%15 : memref<!tpu.dma_semaphore, #tpu.memory_space<semaphore_mem>>)
    %c4_i32 = arith.constant 4 : i32
    %c1_i32_24 = arith.constant 1 : i32
    %c2_i32_25 = arith.constant 2 : i32
    %c0_i32_26 = arith.constant 0 : i32
    %16 = tpu.memref_slice %arg0[%c1_i32_24, %c2_i32_25, %c0_i32_26] : memref<2x4x256xf32, #tpu.memory_space<any>> -> memref<1x1x256xf32, #tpu.memory_space<any>>
    %c1_i32_27 = arith.constant 1 : i32
    %c1_i32_28 = arith.constant 1 : i32
    %c0_i32_29 = arith.constant 0 : i32
    %17 = tpu.memref_slice %arg1[%c1_i32_27, %c1_i32_28, %c0_i32_29] : memref<2x3x256xf32, #tpu.memory_space<any>> -> memref<1x1x256xf32, #tpu.memory_space<any>>
    %18 = tpu.memref_slice %arg2[%c4_i32] : memref<6x!tpu.dma_semaphore, #tpu.memory_space<semaphore_mem>> -> memref<1x!tpu.dma_semaphore, #tpu.memory_space<semaphore_mem>>
    %19 = tpu.memref_squeeze %18 : memref<1x!tpu.dma_semaphore, #tpu.memory_space<semaphore_mem>> -> memref<!tpu.dma_semaphore, #tpu.memory_space<semaphore_mem>>
    tpu.enqueue_dma source(%16 : memref<1x1x256xf32, #tpu.memory_space<any>>) target(%17 : memref<1x1x256xf32, #tpu.memory_space<any>>) target_semaphore(%19 : memref<!tpu.dma_semaphore, #tpu.memory_space<semaphore_mem>>)
    %c5_i32 = arith.constant 5 : i32
    %c1_i32_30 = arith.constant 1 : i32
    %c3_i32_31 = arith.constant 3 : i32
    %c0_i32_32 = arith.constant 0 : i32
    %20 = tpu.memref_slice %arg0[%c1_i32_30, %c3_i32_31, %c0_i32_32] : memref<2x4x256xf32, #tpu.memory_space<any>> -> memref<1x1x256xf32, #tpu.memory_space<any>>
    %c1_i32_33 = arith.constant 1 : i32
    %c2_i32_34 = arith.constant 2 : i32
    %c0_i32_35 = arith.constant 0 : i32
    %21 = tpu.memref_slice %arg1[%c1_i32_33, %c2_i32_34, %c0_i32_35] : memref<2x3x256xf32, #tpu.memory_space<any>> -> memref<1x1x256xf32, #tpu.memory_space<any>>
    %22 = tpu.memref_slice %arg2[%c5_i32] : memref<6x!tpu.dma_semaphore, #tpu.memory_space<semaphore_mem>> -> memref<1x!tpu.dma_semaphore, #tpu.memory_space<semaphore_mem>>
    %23 = tpu.memref_squeeze %22 : memref<1x!tpu.dma_semaphore, #tpu.memory_space<semaphore_mem>> -> memref<!tpu.dma_semaphore, #tpu.memory_space<semaphore_mem>>
    tpu.enqueue_dma source(%20 : memref<1x1x256xf32, #tpu.memory_space<any>>) target(%21 : memref<1x1x256xf32, #tpu.memory_space<any>>) target_semaphore(%23 : memref<!tpu.dma_semaphore, #tpu.memory_space<semaphore_mem>>)
    %c0_i32_36 = arith.constant 0 : i32
    %c0_i32_37 = arith.constant 0 : i32
    %c1_i32_38 = arith.constant 1 : i32
    %c0_i32_39 = arith.constant 0 : i32
    %24 = tpu.memref_slice %arg0[%c0_i32_37, %c1_i32_38, %c0_i32_39] : memref<2x4x256xf32, #tpu.memory_space<any>> -> memref<1x1x256xf32, #tpu.memory_space<any>>
    %c0_i32_40 = arith.constant 0 : i32
    %c0_i32_41 = arith.constant 0 : i32
    %c0_i32_42 = arith.constant 0 : i32
    %25 = tpu.memref_slice %arg1[%c0_i32_40, %c0_i32_41, %c0_i32_42] : memref<2x3x256xf32, #tpu.memory_space<any>> -> memref<1x1x256xf32, #tpu.memory_space<any>>
    %26 = tpu.memref_slice %arg2[%c0_i32_36] : memref<6x!tpu.dma_semaphore, #tpu.memory_space<semaphore_mem>> -> memref<1x!tpu.dma_semaphore, #tpu.memory_space<semaphore_mem>>
    %27 = tpu.memref_squeeze %26 : memref<1x!tpu.dma_semaphore, #tpu.memory_space<semaphore_mem>> -> memref<!tpu.dma_semaphore, #tpu.memory_space<semaphore_mem>>
    tpu.wait_dma2 semaphore(%27 : memref<!tpu.dma_semaphore, #tpu.memory_space<semaphore_mem>>) src(%24 : memref<1x1x256xf32, #tpu.memory_space<any>>) dst(%25 : memref<1x1x256xf32, #tpu.memory_space<any>>)
    %c1_i32_43 = arith.constant 1 : i32
    %c0_i32_44 = arith.constant 0 : i32
    %c2_i32_45 = arith.constant 2 : i32
    %c0_i32_46 = arith.constant 0 : i32
    %28 = tpu.memref_slice %arg0[%c0_i32_44, %c2_i32_45, %c0_i32_46] : memref<2x4x256xf32, #tpu.memory_space<any>> -> memref<1x1x256xf32, #tpu.memory_space<any>>
    %c0_i32_47 = arith.constant 0 : i32
    %c1_i32_48 = arith.constant 1 : i32
    %c0_i32_49 = arith.constant 0 : i32
    %29 = tpu.memref_slice %arg1[%c0_i32_47, %c1_i32_48, %c0_i32_49] : memref<2x3x256xf32, #tpu.memory_space<any>> -> memref<1x1x256xf32, #tpu.memory_space<any>>
    %30 = tpu.memref_slice %arg2[%c1_i32_43] : memref<6x!tpu.dma_semaphore, #tpu.memory_space<semaphore_mem>> -> memref<1x!tpu.dma_semaphore, #tpu.memory_space<semaphore_mem>>
    %31 = tpu.memref_squeeze %30 : memref<1x!tpu.dma_semaphore, #tpu.memory_space<semaphore_mem>> -> memref<!tpu.dma_semaphore, #tpu.memory_space<semaphore_mem>>
    tpu.wait_dma2 semaphore(%31 : memref<!tpu.dma_semaphore, #tpu.memory_space<semaphore_mem>>) src(%28 : memref<1x1x256xf32, #tpu.memory_space<any>>) dst(%29 : memref<1x1x256xf32, #tpu.memory_space<any>>)
    %c2_i32_50 = arith.constant 2 : i32
    %c0_i32_51 = arith.constant 0 : i32
    %c3_i32_52 = arith.constant 3 : i32
    %c0_i32_53 = arith.constant 0 : i32
    %32 = tpu.memref_slice %arg0[%c0_i32_51, %c3_i32_52, %c0_i32_53] : memref<2x4x256xf32, #tpu.memory_space<any>> -> memref<1x1x256xf32, #tpu.memory_space<any>>
    %c0_i32_54 = arith.constant 0 : i32
    %c2_i32_55 = arith.constant 2 : i32
    %c0_i32_56 = arith.constant 0 : i32
    %33 = tpu.memref_slice %arg1[%c0_i32_54, %c2_i32_55, %c0_i32_56] : memref<2x3x256xf32, #tpu.memory_space<any>> -> memref<1x1x256xf32, #tpu.memory_space<any>>
    %34 = tpu.memref_slice %arg2[%c2_i32_50] : memref<6x!tpu.dma_semaphore, #tpu.memory_space<semaphore_mem>> -> memref<1x!tpu.dma_semaphore, #tpu.memory_space<semaphore_mem>>
    %35 = tpu.memref_squeeze %34 : memref<1x!tpu.dma_semaphore, #tpu.memory_space<semaphore_mem>> -> memref<!tpu.dma_semaphore, #tpu.memory_space<semaphore_mem>>
    tpu.wait_dma2 semaphore(%35 : memref<!tpu.dma_semaphore, #tpu.memory_space<semaphore_mem>>) src(%32 : memref<1x1x256xf32, #tpu.memory_space<any>>) dst(%33 : memref<1x1x256xf32, #tpu.memory_space<any>>)
    %c3_i32_57 = arith.constant 3 : i32
    %c1_i32_58 = arith.constant 1 : i32
    %c1_i32_59 = arith.constant 1 : i32
    %c0_i32_60 = arith.constant 0 : i32
    %36 = tpu.memref_slice %arg0[%c1_i32_58, %c1_i32_59, %c0_i32_60] : memref<2x4x256xf32, #tpu.memory_space<any>> -> memref<1x1x256xf32, #tpu.memory_space<any>>
    %c1_i32_61 = arith.constant 1 : i32
    %c0_i32_62 = arith.constant 0 : i32
    %c0_i32_63 = arith.constant 0 : i32
    %37 = tpu.memref_slice %arg1[%c1_i32_61, %c0_i32_62, %c0_i32_63] : memref<2x3x256xf32, #tpu.memory_space<any>> -> memref<1x1x256xf32, #tpu.memory_space<any>>
    %38 = tpu.memref_slice %arg2[%c3_i32_57] : memref<6x!tpu.dma_semaphore, #tpu.memory_space<semaphore_mem>> -> memref<1x!tpu.dma_semaphore, #tpu.memory_space<semaphore_mem>>
    %39 = tpu.memref_squeeze %38 : memref<1x!tpu.dma_semaphore, #tpu.memory_space<semaphore_mem>> -> memref<!tpu.dma_semaphore, #tpu.memory_space<semaphore_mem>>
    tpu.wait_dma2 semaphore(%39 : memref<!tpu.dma_semaphore, #tpu.memory_space<semaphore_mem>>) src(%36 : memref<1x1x256xf32, #tpu.memory_space<any>>) dst(%37 : memref<1x1x256xf32, #tpu.memory_space<any>>)
    %c4_i32_64 = arith.constant 4 : i32
    %c1_i32_65 = arith.constant 1 : i32
    %c2_i32_66 = arith.constant 2 : i32
    %c0_i32_67 = arith.constant 0 : i32
    %40 = tpu.memref_slice %arg0[%c1_i32_65, %c2_i32_66, %c0_i32_67] : memref<2x4x256xf32, #tpu.memory_space<any>> -> memref<1x1x256xf32, #tpu.memory_space<any>>
    %c1_i32_68 = arith.constant 1 : i32
    %c1_i32_69 = arith.constant 1 : i32
    %c0_i32_70 = arith.constant 0 : i32
    %41 = tpu.memref_slice %arg1[%c1_i32_68, %c1_i32_69, %c0_i32_70] : memref<2x3x256xf32, #tpu.memory_space<any>> -> memref<1x1x256xf32, #tpu.memory_space<any>>
    %42 = tpu.memref_slice %arg2[%c4_i32_64] : memref<6x!tpu.dma_semaphore, #tpu.memory_space<semaphore_mem>> -> memref<1x!tpu.dma_semaphore, #tpu.memory_space<semaphore_mem>>
    %43 = tpu.memref_squeeze %42 : memref<1x!tpu.dma_semaphore, #tpu.memory_space<semaphore_mem>> -> memref<!tpu.dma_semaphore, #tpu.memory_space<semaphore_mem>>
    tpu.wait_dma2 semaphore(%43 : memref<!tpu.dma_semaphore, #tpu.memory_space<semaphore_mem>>) src(%40 : memref<1x1x256xf32, #tpu.memory_space<any>>) dst(%41 : memref<1x1x256xf32, #tpu.memory_space<any>>)
    %c5_i32_71 = arith.constant 5 : i32
    %c1_i32_72 = arith.constant 1 : i32
    %c3_i32_73 = arith.constant 3 : i32
    %c0_i32_74 = arith.constant 0 : i32
    %44 = tpu.memref_slice %arg0[%c1_i32_72, %c3_i32_73, %c0_i32_74] : memref<2x4x256xf32, #tpu.memory_space<any>> -> memref<1x1x256xf32, #tpu.memory_space<any>>
    %c1_i32_75 = arith.constant 1 : i32
    %c2_i32_76 = arith.constant 2 : i32
    %c0_i32_77 = arith.constant 0 : i32
    %45 = tpu.memref_slice %arg1[%c1_i32_75, %c2_i32_76, %c0_i32_77] : memref<2x3x256xf32, #tpu.memory_space<any>> -> memref<1x1x256xf32, #tpu.memory_space<any>>
    %46 = tpu.memref_slice %arg2[%c5_i32_71] : memref<6x!tpu.dma_semaphore, #tpu.memory_space<semaphore_mem>> -> memref<1x!tpu.dma_semaphore, #tpu.memory_space<semaphore_mem>>
    %47 = tpu.memref_squeeze %46 : memref<1x!tpu.dma_semaphore, #tpu.memory_space<semaphore_mem>> -> memref<!tpu.dma_semaphore, #tpu.memory_space<semaphore_mem>>
    tpu.wait_dma2 semaphore(%47 : memref<!tpu.dma_semaphore, #tpu.memory_space<semaphore_mem>>) src(%44 : memref<1x1x256xf32, #tpu.memory_space<any>>) dst(%45 : memref<1x1x256xf32, #tpu.memory_space<any>>)
    return
  }
}

</mosaic_0001>

<llo_original>
// kernel: tpu_custom_call.1
$region0: #{tpu_custom_call.1}
  #allocation0 [shape = 'u32[]', space=smem, size = 0x4, offset = 0x4, fixed_abs, tag = 'smem constant byte address 0x4 - core index']
  #allocation1 [shape = 'u32[144,128]{1,0:T(1,128)}', space=vmem, size = 0x12000, scoped, tag = 'internal scratch']
  #allocation2 [shape = 's32[6]{0}', space=sflag, size = 0x18, scoped, tag = 'scratch operand']
  #allocation3 [shape = 's32[]', space=sflag, size = 0x4, offset = 0, fixed_abs, tag = 'sflag constant byte address 0x0 - dummy sync flag']
  #allocation4 [shape = 's32[]', space=sflag, size = 0x4, offset = 0, fixed_abs, tag = 'sflag constant byte address 0x0 - dummy sync flag']
  #allocation5 [shape = 's32[]', space=sflag, size = 0x4, offset = 0, fixed_abs, tag = 'sflag constant byte address 0x0 - dummy sync flag']
  #allocation6 [shape = 's32[]', space=sflag, size = 0x4, offset = 0, fixed_abs, tag = 'sflag constant byte address 0x0 - dummy sync flag']
  #allocation7 [shape = 's32[]', space=sflag, size = 0x4, offset = 0, fixed_abs, tag = 'sflag constant byte address 0x0 - dummy sync flag']
  #allocation8 [shape = 's32[]', space=sflag, size = 0x4, offset = 0, fixed_abs, tag = 'sflag constant byte address 0x0 - dummy sync flag']
  %s0 = inlined_call_operand.hbm [shape: f32[2,4,256], index: 0, kind: input, shape index: {}]
  %s1 = inlined_call_operand.vmem [shape: f32[2,3,256], index: 1, kind: output, shape index: {}]
  %s2 = sld [smem:[#allocation0]]
  $region2: #{tpu_custom_call.1} parent=0
    _
  %s4 = ssub.s32 1, %s2
  %s5 = scalar_select 0, %s4, %s2
  %s6 = scalar_lea.hbm %s0, 16
  %s8 = sshll.u32 %s1, 4
  %s9 = int_to_ptr.vmem [resolvable:$true] %s8
  %11 = dma.hbm_to_vmem [thread:$0]  %s6, 32, %s9, [#allocation2], 64, 64, 1
  %s12 = scalar_lea.hbm %s0, 32
  %s13 = scalar_lea.vmem %s1, 1
  %s14 = scalar_lea.sflag [#allocation2], 1
  %s16 = sshll.u32 %s13, 4
  %s17 = int_to_ptr.vmem [resolvable:$true] %s16
  %19 = dma.hbm_to_vmem [thread:$0]  %s12, 32, %s17, %s14, 64, 64, 1
  %s20 = scalar_lea.hbm %s0, 48
  %s21 = scalar_lea.vmem %s1, 2
  %s22 = scalar_lea.sflag [#allocation2], 2
  %s24 = sshll.u32 %s21, 4
  %s25 = int_to_ptr.vmem [resolvable:$true] %s24
  %27 = dma.hbm_to_vmem [thread:$0]  %s20, 32, %s25, %s22, 64, 64, 1
  %s28 = scalar_lea.hbm %s0, 144
  %s29 = scalar_lea.vmem %s1, 8
  %s30 = scalar_lea.sflag [#allocation2], 3
  %s32 = sshll.u32 %s29, 4
  %s33 = int_to_ptr.vmem [resolvable:$true] %s32
  %35 = dma.hbm_to_vmem [thread:$0]  %s28, 32, %s33, %s30, 64, 64, 1
  %s36 = scalar_lea.hbm %s0, 160
  %s37 = scalar_lea.vmem %s1, 9
  %s38 = scalar_lea.sflag [#allocation2], 4
  %s40 = sshll.u32 %s37, 4
  %s41 = int_to_ptr.vmem [resolvable:$true] %s40
  %43 = dma.hbm_to_vmem [thread:$0]  %s36, 32, %s41, %s38, 64, 64, 1
  %s44 = scalar_lea.hbm %s0, 176
  %s45 = scalar_lea.vmem %s1, 10
  %s46 = scalar_lea.sflag [#allocation2], 5
  %s48 = sshll.u32 %s45, 4
  %s49 = int_to_ptr.vmem [resolvable:$true] %s48
  %51 = dma.hbm_to_vmem [thread:$0]  %s44, 32, %s49, %s46, 64, 64, 1
  %s52 = smul.u32 1, 1
  %s53 = smul.u32 %s52, 2
  %s54 = sshll.u32 %s53, 4
  %55 = dma.done [#allocation2], %s54
  %s56 = sshll.u32 %s53, 4
  %57 = dma.done %s14, %s56
  %s58 = sshll.u32 %s53, 4
  %59 = dma.done %s22, %s58
  %s60 = sshll.u32 %s53, 4
  %61 = dma.done %s30, %s60
  %s62 = sshll.u32 %s53, 4
  %63 = dma.done %s38, %s62
  %s64 = sshll.u32 %s53, 4
  %65 = dma.done %s46, %s64
  %66 = vsyncmov [#allocation2]
  %s67 = vpop.sfrf %66
  %p68 = scmp.eq.s32.totalorder %s67, 0
  %p69 = pneg %p68
  %71 = shalt.err (%p69)
  %s72 = scalar_lea.sflag [#allocation2], 1
  %73 = vsyncmov %s72
  %s74 = vpop.sfrf %73
  %p75 = scmp.eq.s32.totalorder %s74, 0
  %p76 = pneg %p75
  %78 = shalt.err (%p76)
  %s79 = scalar_lea.sflag [#allocation2], 2
  %80 = vsyncmov %s79
  %s81 = vpop.sfrf %80
  %p82 = scmp.eq.s32.totalorder %s81, 0
  %p83 = pneg %p82
  %85 = shalt.err (%p83)
  %s86 = scalar_lea.sflag [#allocation2], 3
  %87 = vsyncmov %s86
  %s88 = vpop.sfrf %87
  %p89 = scmp.eq.s32.totalorder %s88, 0
  %p90 = pneg %p89
  %92 = shalt.err (%p90)
  %s93 = scalar_lea.sflag [#allocation2], 4
  %94 = vsyncmov %s93
  %s95 = vpop.sfrf %94
  %p96 = scmp.eq.s32.totalorder %s95, 0
  %p97 = pneg %p96
  %99 = shalt.err (%p97)
  %s100 = scalar_lea.sflag [#allocation2], 5
  %101 = vsyncmov %s100
  %s102 = vpop.sfrf %101
  %p103 = scmp.eq.s32.totalorder %s102, 0
  %p104 = pneg %p103
  %106 = shalt.err (%p104)

</llo_original>
